<compile_context>
chip_gen: v7x
topology: tpu7x:2x2x1
jax: 0.10.0
libtpu: 0.0.40
codegen_flags: <defaults>
</compile_context>

<pallas_src>
import math

import jax
import jax.numpy as jnp
from jax.experimental import pallas as pl
from jax.experimental.pallas import tpu as pltpu


def _round_up(x: int, m: int) -> int:
    return ((x + m - 1) // m) * m


def _pad_to(x, shape):
    pads = tuple((0, s - d) for d, s in zip(x.shape, shape))
    if any(hi for _, hi in pads):
        return jnp.pad(x, pads)
    return x


# --------------------------------------------------------------------------
# Kernels: grid = (M tiles, N tiles, K tiles); K is the reduction axis.
# Output block index does not depend on k, so o_ref stays VMEM-resident across
# the K loop and is used directly as the f32 accumulator (no scratch).
# --------------------------------------------------------------------------
def _mm_kernel(a_ref, b_ref, o_ref):
    k = pl.program_id(2)

    @pl.when(k == 0)
    def _init():
        o_ref[...] = jnp.zeros_like(o_ref)

    o_ref[...] += jnp.dot(a_ref[...], b_ref[...],
                          preferred_element_type=jnp.float32)


def _mm_bias_kernel(a_ref, b_ref, bias_ref, o_ref):
    k = pl.program_id(2)

    @pl.when(k == 0)
    def _init():
        o_ref[...] = jnp.zeros_like(o_ref)

    o_ref[...] += jnp.dot(a_ref[...], b_ref[...],
                          preferred_element_type=jnp.float32)

    @pl.when(k == pl.num_programs(2) - 1)
    def _bias():
        # bias_ref is (1, tn) f32; broadcast-add over the (tm, tn) tile.
        o_ref[...] += bias_ref[...]


def _matmul_padded(a, b, bias, *, tm, tk, tn):
    """(Mp,Kp) @ (Kp,Np) (+ bias) on pre-padded, tile-aligned f32 inputs.

    Returns the padded (Mp, Np) f32 output (caller slices if needed).
    """
    Mp, Kp = a.shape
    Kp2, Np = b.shape
    assert Kp == Kp2, (a.shape, b.shape)
    assert Mp % tm == 0 and Kp % tk == 0 and Np % tn == 0, (a.shape, b.shape, tm, tk, tn)

    grid = (Mp // tm, Np // tn, Kp // tk)

    # Double-buffered f32 tile footprint; raise the scoped-VMEM limit above the
    # small defaults (16 MiB on v5e, 32 MiB on v6e/v7x) but stay well under
    # v7x's 64 MiB physical VMEM.
    tile_bytes = 4 * 2 * (tm * tk + tk * tn + tm * tn + tn)
    vmem_limit = int(min(48 * 1024 * 1024,
                         max(32 * 1024 * 1024, (tile_bytes * 3) // 2)))

    cost = pl.CostEstimate(
        flops=2 * Mp * Np * Kp,
        transcendentals=0,
        bytes_accessed=4 * (Mp * Kp + Kp * Np + Mp * Np + Np))

    a_spec = pl.BlockSpec((tm, tk), lambda i, j, k: (i, k))
    b_spec = pl.BlockSpec((tk, tn), lambda i, j, k: (k, j))
    o_spec = pl.BlockSpec((tm, tn), lambda i, j, k: (i, j))

    if bias is None:
        kernel = _mm_kernel
        in_specs = [a_spec, b_spec]
        operands = (a, b)
    else:
        kernel = _mm_bias_kernel
        in_specs = [a_spec, b_spec,
                    pl.BlockSpec((1, tn), lambda i, j, k: (0, j))]
        operands = (a, b, bias)

    return pl.pallas_call(
        kernel,
        out_shape=jax.ShapeDtypeStruct((Mp, Np), jnp.float32),
        grid_spec=pltpu.PrefetchScalarGridSpec(
            num_scalar_prefetch=0,
            grid=grid,
            in_specs=in_specs,
            out_specs=o_spec,
        ),
        compiler_params=pltpu.CompilerParams(
            # i/j tiles are independent -> megacore-shardable; k accumulates.
            dimension_semantics=("parallel", "parallel", "arbitrary"),
            vmem_limit_bytes=vmem_limit),
        cost_estimate=cost,
    )(*operands)


def graph_convolution(x, adj, weight, bias=None, *, tm=512, tk=512, tn=256):
    """GraphConvolution.forward: adj @ (x @ weight) (+ bias).

    x:      (N_nodes, in_features)
    adj:    (N_nodes, N_nodes)   -- dense adjacency (see TODO above)
    weight: (in_features, out_features)
    bias:   (out_features,) or None
    """
    n_nodes, fin = x.shape
    fin2, fout = weight.shape
    assert fin == fin2, (x.shape, weight.shape)
    assert adj.shape == (n_nodes, n_nodes), adj.shape

    x = x.astype(jnp.float32)
    adj = adj.astype(jnp.float32)
    weight = weight.astype(jnp.float32)

    # Keep requested tiles lane-aligned (they can appear as lane axes).
    tm = _round_up(max(tm, 128), 128)
    tk = _round_up(max(tk, 128), 128)
    tn = _round_up(max(tn, 128), 128)

    # --- tile / padding selection -------------------------------------------
    # The node axis appears as rows of x / adj / output, columns of adj (the K
    # axis of the second matmul) and rows of support.  If the 8-aligned node
    # dim fits in one tile, use a full-extent node block: minimal padding of
    # adj / x, and the adj matmul's K axis is fully VMEM-resident (single K
    # step).  Otherwise fall back to a 128-aligned streaming tile.
    np8 = _round_up(n_nodes, 8)
    t_node = np8 if np8 <= tm else tm
    n_pad = _round_up(n_nodes, t_node)

    t_fin = min(tk, _round_up(fin, 128))
    fin_pad = _round_up(fin, t_fin)
    t_fout = min(tn, _round_up(fout, 128))
    fout_pad = _round_up(fout, t_fout)

    # Zero padding keeps the matmuls exact.  x / weight / bias pads are cheap;
    # adj is only padded when n_nodes is not tile-aligned (for a static graph,
    # pre-pad adj once outside the forward to avoid even that copy).
    x_p = _pad_to(x, (n_pad, fin_pad))
    w_p = _pad_to(weight, (fin_pad, fout_pad))
    adj_p = _pad_to(adj, (n_pad, n_pad))
    bias_p = None
    if bias is not None:
        bias_p = _pad_to(bias.reshape(1, fout).astype(jnp.float32),
                         (1, fout_pad))

    # support stays padded between the two calls (its padded rows/cols are
    # exactly zero because x / weight were zero-padded) -> no slice / re-pad
    # HBM round trip of the intermediate.
    support_p = _matmul_padded(x_p, w_p, None, tm=t_node, tk=t_fin, tn=t_fout)
    out_p = _matmul_padded(adj_p, support_p, bias_p,
                           tm=t_node, tk=t_node, tn=t_fout)

    return out_p[:n_nodes, :fout]


def _reference(x, adj, weight, bias=None):
    support = jnp.dot(x, weight, precision=jax.lax.Precision.HIGHEST)
    out = jnp.dot(adj, support, precision=jax.lax.Precision.HIGHEST)
    if bias is not None:
        out = out + bias
    return out


def _make_inputs(key, n_nodes, in_features, out_features):
    kx, ka, kw, kb = jax.random.split(key, 4)
    x = jax.random.normal(kx, (n_nodes, in_features), dtype=jnp.float32)

    # Dense, row-normalized random adjacency with self-loops.
    adj_raw = (jax.random.uniform(ka, (n_nodes, n_nodes)) < 0.5).astype(jnp.float32)
    adj_raw = adj_raw + jnp.eye(n_nodes, dtype=jnp.float32)
    adj = adj_raw / jnp.sum(adj_raw, axis=1, keepdims=True)

    # Parameters initialized like reset_parameters(): U(-stdv, stdv).
    stdv = 1.0 / math.sqrt(out_features)
    weight = jax.random.uniform(kw, (in_features, out_features),
                                dtype=jnp.float32, minval=-stdv, maxval=stdv)
    bias = jax.random.uniform(kb, (out_features,),
                              dtype=jnp.float32, minval=-stdv, maxval=stdv)
    return x, adj, weight, bias


if __name__ == "__main__":
    key = jax.random.PRNGKey(0)
    k1, k2 = jax.random.split(key)

    # Small shapes implied by the forward: input (N_nodes, in_features),
    # adj (N_nodes, N_nodes), weight (in_features, out_features).
    configs = [
        (k1, 8, 16, 32),   # aligned-ish tiny case
        (k2, 50, 20, 12),  # ragged case exercising the padding / slicing paths
    ]

    for kk, n_nodes, fin, fout in configs:
        x, adj, weight, bias = _make_inputs(kk, n_nodes, fin, fout)

        # --- With bias ---
        out = graph_convolution(x, adj, weight, bias)
        jax.block_until_ready(out)
        ref = _reference(x, adj, weight, bias)
        assert out.shape == (n_nodes, fout), out.shape
        assert jnp.allclose(out, ref, atol=1e-4, rtol=1e-4), \
            float(jnp.max(jnp.abs(out - ref)))

        # --- Without bias ---
        out_nb = graph_convolution(x, adj, weight, None)
        jax.block_until_ready(out_nb)
        ref_nb = _reference(x, adj, weight, None)
        assert jnp.allclose(out_nb, ref_nb, atol=1e-4, rtol=1e-4), \
            float(jnp.max(jnp.abs(out_nb - ref_nb)))

    print("KERNEL_OK")
</pallas_src>

<mosaic_0001>
module attributes {stable_mosaic.version = 11 : i64} {
  func.func @_mm_kernel(%arg0: i32, %arg1: i32, %arg2: i32, %arg3: memref<8x128xf32, #tpu.memory_space<vmem>>, %arg4: memref<128x128xf32, #tpu.memory_space<vmem>>, %arg5: memref<8x128xf32, #tpu.memory_space<vmem>>) attributes {dimension_semantics = [#tpu.dimension_semantics<parallel>, #tpu.dimension_semantics<parallel>, #tpu.dimension_semantics<arbitrary>], iteration_bounds = array<i64: 1, 1, 1>, scalar_prefetch = 0 : i64, scratch_operands = 0 : i64, tpu.core_type = #tpu.core_type<tc>, window_params = [{transform_indices = @transform_0, window_bounds = array<i64: 8, 128>}, {transform_indices = @transform_1, window_bounds = array<i64: 128, 128>}, {transform_indices = @transform_2, window_bounds = array<i64: 8, 128>}]} {
    %c0_i32 = arith.constant 0 : i32
    %0 = arith.cmpi eq, %arg2, %c0_i32 : i32
    %1 = arith.extui %0 : i1 to i32
    %c0_i32_0 = arith.constant 0 : i32
    %2 = arith.cmpi ne, %1, %c0_i32_0 : i32
    scf.if %2 {
      %cst_8 = arith.constant 0.000000e+00 : f32
      %9 = vector.broadcast %cst_8 : f32 to vector<8x128xf32>
      %c0_9 = arith.constant 0 : index
      %c0_10 = arith.constant 0 : index
      %10 = vector.load %arg5[%c0_9, %c0_10] : memref<8x128xf32, #tpu.memory_space<vmem>>, vector<8x128xf32>
      tpu.vector_store %arg5[%c0_9, %c0_10], %9 {strides = array<i32>} : memref<8x128xf32, #tpu.memory_space<vmem>>, vector<8x128xf32>,
    } else {
    }
    %c0 = arith.constant 0 : index
    %c0_1 = arith.constant 0 : index
    %3 = vector.load %arg5[%c0, %c0_1] : memref<8x128xf32, #tpu.memory_space<vmem>>, vector<8x128xf32>
    %c0_2 = arith.constant 0 : index
    %c0_3 = arith.constant 0 : index
    %4 = vector.load %arg3[%c0_2, %c0_3] : memref<8x128xf32, #tpu.memory_space<vmem>>, vector<8x128xf32>
    %c0_4 = arith.constant 0 : index
    %c0_5 = arith.constant 0 : index
    %5 = vector.load %arg4[%c0_4, %c0_5] : memref<128x128xf32, #tpu.memory_space<vmem>>, vector<128x128xf32>
    %cst = arith.constant dense<0.000000e+00> : vector<8x128xf32>
    %6 = tpu.matmul %4, %5, %cst {dimension_numbers = #tpu.dot_dimension_numbers<[1], [0], [0], [1], [0, 0, 1, 1], [], []>} : vector<8x128xf32>, vector<128x128xf32>, vector<8x128xf32> -> vector<8x128xf32>
    %7 = arith.addf %3, %6 : vector<8x128xf32>
    %c0_6 = arith.constant 0 : index
    %c0_7 = arith.constant 0 : index
    %8 = vector.load %arg5[%c0_6, %c0_7] : memref<8x128xf32, #tpu.memory_space<vmem>>, vector<8x128xf32>
    tpu.vector_store %arg5[%c0_6, %c0_7], %7 {strides = array<i32>} : memref<8x128xf32, #tpu.memory_space<vmem>>, vector<8x128xf32>,
    return
  }
  func.func @transform_0(%arg0: i32, %arg1: i32, %arg2: i32) -> (i32, i32) {
    %c0_i32 = arith.constant 0 : i32
    return %arg0, %arg2 : i32, i32
  }
  func.func @transform_1(%arg0: i32, %arg1: i32, %arg2: i32) -> (i32, i32) {
    %c0_i32 = arith.constant 0 : i32
    return %arg2, %arg1 : i32, i32
  }
  func.func @transform_2(%arg0: i32, %arg1: i32, %arg2: i32) -> (i32, i32) {
    %c0_i32 = arith.constant 0 : i32
    return %arg0, %arg1 : i32, i32
  }
}

</mosaic_0001>

<llo_original>
// kernel: tpu_custom_call.1
$region0: #{tpu_custom_call.1}
  #allocation0 [shape = 'u32[]', space=smem, size = 0x4, offset = 0x4, fixed_abs, tag = 'smem constant byte address 0x4 - core index']
  #allocation1 [shape = 'u32[144,128]{1,0:T(1,128)}', space=vmem, size = 0x12000, scoped, tag = 'internal scratch']
  %s0 = inlined_call_operand.hbm [shape: f32[8,128], index: 0, kind: input, shape index: {}]
  %s1 = inlined_call_operand.hbm [shape: f32[128,128], index: 1, kind: input, shape index: {}]
  %s2 = inlined_call_operand.hbm [shape: f32[8,128], index: 2, kind: output, shape index: {}]
  %s3 = sld [smem:[#allocation0]]
  $region30: #{tpu_custom_call.1} parent=0
    _
  %s5 = ssub.s32 1, %s3
  %s6 = scalar_select 0, %s5, %s3
  $region1: #{tpu_custom_call.1} parent=0
    #allocation2 [shape = 'u8[4096]{0}', space=vmem, size = 0x1000, scoped, tag = 'input window, operand 0, single buffered']
    #allocation3 [shape = 's32[1]{0}', space=sflag, size = 0x4, scoped, tag = 'scoped memory for tpu_custom_call.1']
    #allocation4 [shape = 's32[1]{0}', space=sflag, size = 0x4, scoped, tag = 'scoped memory for tpu_custom_call.1']
    #allocation5 [shape = 'u8[65536]{0}', space=vmem, size = 0x10000, scoped, tag = 'input window, operand 1, single buffered']
    #allocation6 [shape = 's32[1]{0}', space=sflag, size = 0x4, scoped, tag = 'scoped memory for tpu_custom_call.1']
    #allocation7 [shape = 'u8[4096]{0}', space=vmem, size = 0x1000, scoped, tag = 'output window, operand 0, single buffered']
    %7 = vsyncpa [#allocation3], 0
    %8 = vsyncpa [#allocation6], 0
    %9 = vsyncpa [#allocation4], 0
    // Predicated region
    $region2: #{tpu_custom_call.1} parent=1 // pred_check
      _
    $region3: #{tpu_custom_call.1} parent=1 // pred_check_branch
      %11 = sbr.rel (0) target = $region5
    $region4: #{tpu_custom_call.1} parent=1 // pred_region
      %s13 = ssub.s32 128, 128
      %14 = vsyncadd [#allocation3], %s13
      %s16 = sshll.u32 [#allocation2], 4
      %s17 = int_to_ptr.vmem [resolvable:$true] %s16
      %19 = dma.hbm_to_vmem [thread:$0]  %s0, 128, %s17, [#allocation3]
    $region5: #{tpu_custom_call.1} parent=1 // pred_fallthru
      _
    // Predicated region
    $region6: #{tpu_custom_call.1} parent=1 // pred_check
      _
    $region7: #{tpu_custom_call.1} parent=1 // pred_check_branch
      %21 = sbr.rel (0) target = $region9
    $region8: #{tpu_custom_call.1} parent=1 // pred_region
      %s23 = ssub.s32 2048, 2048
      %24 = vsyncadd [#allocation6], %s23
      %s25 = sshll.u32 [#allocation5], 4
      %s26 = int_to_ptr.vmem [resolvable:$true] %s25
      %31 = dma.hbm_to_vmem [thread:$0]  %s1, 2048, %s26, [#allocation6], 128, 128, 8
    $region9: #{tpu_custom_call.1} parent=1 // pred_fallthru
      _
    // Predicated region
    $region10: #{tpu_custom_call.1} parent=1 // pred_check
      _
    $region11: #{tpu_custom_call.1} parent=1 // pred_check_branch
      %33 = sbr.rel (0) target = $region13
    $region12: #{tpu_custom_call.1} parent=1 // pred_region
      %34 = dma.done [#allocation3], 128
    $region13: #{tpu_custom_call.1} parent=1 // pred_fallthru
      _
    // Predicated region
    $region14: #{tpu_custom_call.1} parent=1 // pred_check
      _
    $region15: #{tpu_custom_call.1} parent=1 // pred_check_branch
      %36 = sbr.rel (0) target = $region17
    $region16: #{tpu_custom_call.1} parent=1 // pred_region
      %37 = dma.done [#allocation6], 2048
    $region17: #{tpu_custom_call.1} parent=1 // pred_fallthru
      _
    %p38 = scmp.eq.s32.totalorder 0, 0
    // Predicated region
    $region18: #{tpu_custom_call.1} parent=1 // pred_check
      %p39 = pneg %p38
    $region19: #{tpu_custom_call.1} parent=1 // pred_check_branch
      %41 = sbr.rel (%p39) target = $region21
    $region20: #{tpu_custom_call.1} parent=1 // pred_region
      %42 = vst [vmem:[#allocation7] sm:$0xff] 0.0
    $region21: #{tpu_custom_call.1} parent=1 // pred_fallthru
      _
    %v43 = vld [vmem:[#allocation7] sm:$0xff]
    %v44 = vld [vmem:[#allocation2] sm:$0xff]
    %v45 = vld [vmem:[#allocation5] sm:$0xff]
    %v46 = vld [vmem:[#allocation5 + $0x8] sm:$0xff]
    %v47 = vld [vmem:[#allocation5 + $0x10] sm:$0xff]
    %v48 = vld [vmem:[#allocation5 + $0x18] sm:$0xff]
    %v49 = vld [vmem:[#allocation5 + $0x20] sm:$0xff]
    %v50 = vld [vmem:[#allocation5 + $0x28] sm:$0xff]
    %v51 = vld [vmem:[#allocation5 + $0x30] sm:$0xff]
    %v52 = vld [vmem:[#allocation5 + $0x38] sm:$0xff]
    %v53 = vld [vmem:[#allocation5 + $0x40] sm:$0xff]
    %v54 = vld [vmem:[#allocation5 + $0x48] sm:$0xff]
    %v55 = vld [vmem:[#allocation5 + $0x50] sm:$0xff]
    %v56 = vld [vmem:[#allocation5 + $0x58] sm:$0xff]
    %v57 = vld [vmem:[#allocation5 + $0x60] sm:$0xff]
    %v58 = vld [vmem:[#allocation5 + $0x68] sm:$0xff]
    %v59 = vld [vmem:[#allocation5 + $0x70] sm:$0xff]
    %v60 = vld [vmem:[#allocation5 + $0x78] sm:$0xff]
    %61 = vmatprep.subr.mxu0 0.0
    %62 = vmatpush1.msra.mxu0 %v45
    %63 = vmatprep.subr.mxu0 0.0
    %64 = vmatpush1.msra.mxu0 %v46
    %65 = vmatprep.subr.mxu0 0.0
    %66 = vmatpush1.msra.mxu0 %v47
    %67 = vmatprep.subr.mxu0 0.0
    %68 = vmatpush1.msra.mxu0 %v48
    %69 = vmatprep.subr.mxu0 0.0
    %70 = vmatpush1.msra.mxu0 %v49
    %71 = vmatprep.subr.mxu0 0.0
    %72 = vmatpush1.msra.mxu0 %v50
    %73 = vmatprep.subr.mxu0 0.0
    %74 = vmatpush1.msra.mxu0 %v51
    %75 = vmatprep.subr.mxu0 0.0
    %76 = vmatpush1.msra.mxu0 %v52
    %77 = vmatprep.subr.mxu0 0.0
    %78 = vmatpush1.msra.mxu0 %v53
    %79 = vmatprep.subr.mxu0 0.0
    %80 = vmatpush1.msra.mxu0 %v54
    %81 = vmatprep.subr.mxu0 0.0
    %82 = vmatpush1.msra.mxu0 %v55
    %83 = vmatprep.subr.mxu0 0.0
    %84 = vmatpush1.msra.mxu0 %v56
    %85 = vmatprep.subr.mxu0 0.0
    %86 = vmatpush1.msra.mxu0 %v57
    %87 = vmatprep.subr.mxu0 0.0
    %88 = vmatpush1.msra.mxu0 %v58
    %89 = vmatprep.subr.mxu0 0.0
    %90 = vmatpush1.msra.mxu0 %v59
    %91 = vmatprep.subr.mxu0 0.0
    %92 = vmatpush1.msra.mxu0 %v60
    %93 = vmatprep.subr.mxu0 0.0
    %94 = vmatpush1.msra.mxu0 0.0
    %95 = vmatprep.subr.mxu0 0.0
    %96 = vmatpush1.msra.mxu0 0.0
    %97 = vmatprep.subr.mxu0 0.0
    %98 = vmatpush1.msra.mxu0 0.0
    %99 = vmatprep.subr.mxu0 0.0
    %100 = vmatpush1.msra.mxu0 0.0
    %101 = vmatprep.subr.mxu0 0.0
    %102 = vmatpush1.msra.mxu0 0.0
    %103 = vmatprep.subr.mxu0 0.0
    %104 = vmatpush1.msra.mxu0 0.0
    %105 = vmatprep.subr.mxu0 0.0
    %106 = vmatpush1.msra.mxu0 0.0
    %107 = vmatprep.subr.mxu0 0.0
    %108 = vmatpush1.msra.mxu0 0.0
    %109 = vmatprep.subr.mxu0 0.0
    %110 = vmatpush1.msra.mxu0 0.0
    %111 = vmatprep.subr.mxu0 0.0
    %112 = vmatpush1.msra.mxu0 0.0
    %113 = vmatprep.subr.mxu0 0.0
    %114 = vmatpush1.msra.mxu0 0.0
    %115 = vmatprep.subr.mxu0 0.0
    %116 = vmatpush1.msra.mxu0 0.0
    %117 = vmatprep.subr.mxu0 0.0
    %118 = vmatpush1.msra.mxu0 0.0
    %119 = vmatprep.subr.mxu0 0.0
    %120 = vmatpush1.msra.mxu0 0.0
    %121 = vmatprep.subr.mxu0 0.0
    %122 = vmatpush1.msra.mxu0 0.0
    %123 = vmatprep.subr.mxu0 0.0
    %124 = vmatpush1.msra.mxu0 0.0
    %125 = vmatprep.mubr.f32.mxu0 0.0
    %126 = vmatmul.mubr.f32.gmra.mrb[0].mxu0 %v44
    %v127 = vpop.f32.mrb[0].mxu0
    %v128 = vadd.f32 0.0, %v127
    %v129 = vpop.f32.mrb[0].mxu0
    %130 = vdwg.mxu0
    %v131 = vadd.f32 %v43, %v128
    %132 = vst [vmem:[#allocation7] sm:$0xff] %v131
    // Predicated region
    $region22: #{tpu_custom_call.1} parent=1 // pred_check
      _
    $region23: #{tpu_custom_call.1} parent=1 // pred_check_branch
      %134 = sbr.rel (0) target = $region25
    $region24: #{tpu_custom_call.1} parent=1 // pred_region
      %s136 = ssub.s32 128, 128
      %137 = vsyncadd [#allocation4], %s136
      %s139 = sshll.u32 [#allocation7], 4
      %s140 = int_to_ptr.vmem [resolvable:$true] %s139
      %142 = dma.vmem_to_hbm [thread:$0]  %s140, 128, %s2, [#allocation4]
    $region25: #{tpu_custom_call.1} parent=1 // pred_fallthru
      _
    // Predicated region
    $region26: #{tpu_custom_call.1} parent=1 // pred_check
      _
    $region27: #{tpu_custom_call.1} parent=1 // pred_check_branch
      %144 = sbr.rel (0) target = $region29
    $region28: #{tpu_custom_call.1} parent=1 // pred_region
      %145 = dma.done [#allocation4], 128
    $region29: #{tpu_custom_call.1} parent=1 // pred_fallthru
      _
    %146 = vsyncpa [#allocation3], 1
    %147 = vsyncpa [#allocation6], 1
    %148 = vsyncpa [#allocation4], 1

</llo_original>
